<compile_context>
chip_gen: v7x
topology: tpu7x:2x2x1
jax: 0.10.0
libtpu: 0.0.40
codegen_flags: <defaults>
</compile_context>

<pallas_src>
import functools

import jax
import jax.numpy as jnp
from jax.experimental import pallas as pl
from jax.experimental.pallas import tpu as pltpu


def route_func_kernel(x_ref, r_ref, bcast_ref, wg_ref, bg_ref, waf_ref,
                      bab_ref, wbf_ref, o_ref,
                      pool_ref, ystk_ref, zstk_ref, *, K0, K1, T, HW):
    h = pl.program_id(1)
    Nc = x_ref.shape[0]
    C = wg_ref.shape[0]
    Cm = waf_ref.shape[0]
    Cp0 = waf_ref.shape[1] // K0
    Cp1 = wbf_ref.shape[1] // K1
    NT = Nc * T
    pad0, pad1 = K0 // 2, K1 // 2
    bf16, f32 = jnp.bfloat16, jnp.float32

    # ---- first HW step of this batch chunk: reset the pooled accumulator and
    # zero the stack scratch once (only the pad rows/columns actually need it;
    # the interior rows are fully rewritten on the final step).
    @pl.when(h == 0)
    def _():
        pool_ref[...] = jnp.zeros_like(pool_ref)
        ystk_ref[...] = jnp.zeros_like(ystk_ref)
        zstk_ref[...] = jnp.zeros_like(zstk_ref)

    # ---- every HW step: accumulate the spatial sum of this tile in f32.
    pool_ref[...] += jnp.sum(x_ref[...].astype(f32), axis=-1)     # (Nc, C, T)

    # ---- last HW step: the routing MLP on the pooled activations.
    @pl.when(h == pl.num_programs(1) - 1)
    def _():
        p3 = pool_ref[...] * (1.0 / HW)                            # (Nc, C, T)
        if Nc == 1:
            pooled = p3[0]                                         # (C, NT)
        else:
            pooled = jnp.concatenate([p3[n] for n in range(Nc)], axis=-1)

        # 1x1x1 conv `g` on the temporal global pool: average per sample
        # (reduce), mix channels at lane width Nc, broadcast back over T.
        gp = jnp.dot(pooled.astype(bf16), r_ref[...],
                     preferred_element_type=f32)                   # (C, Nc)
        gmix = jnp.dot(wg_ref[...], gp.astype(bf16),
                       preferred_element_type=f32)                 # (C, Nc)
        if Nc == 1:
            gexp = jnp.broadcast_to(gmix, (C, NT))                 # lane bcast
        else:
            gexp = jnp.dot(gmix.astype(bf16), bcast_ref[...],
                           preferred_element_type=f32)             # (C, NT)
        y = pooled + gexp + bg_ref[...]                            # (C, NT) f32

        def shift_lanes(v, s):
            # out[:, j] = v[:, (j + s) mod NT]; wrapped columns get masked
            # below.  (pltpu.roll would do this on the XLU at larger widths.)
            if s == 0:
                return v
            k = s % NT
            return jnp.concatenate([v[:, k:], v[:, :k]], axis=-1)

        def stack_taps(v, stk_ref, K, pad, Cpad, rows):
            # Fused temporal-conv input: rows [dk*Cpad, dk*Cpad+rows) hold v
            # shifted by (dk - pad); the iota mask implements the per-sample
            # zero padding (no cross-sample temporal leakage).
            t_in = jax.lax.broadcasted_iota(jnp.int32, (rows, NT), 1) % T
            for dk in range(K):
                s = dk - pad
                shifted = shift_lanes(v, s)
                lo, hi = max(0, -s), T - max(0, s)
                if lo > 0 or hi < T:
                    shifted = jnp.where((t_in >= lo) & (t_in < hi),
                                        shifted, 0.0)
                stk_ref[dk * Cpad:dk * Cpad + rows, :] = shifted.astype(bf16)

        # temporal conv `a` (eval-mode BN folded into weight/bias), then ReLU.
        stack_taps(y, ystk_ref, K0, pad0, Cp0, C)
        z = jnp.maximum(
            jnp.dot(waf_ref[...], ystk_ref[...],
                    preferred_element_type=f32) + bab_ref[...], 0.0)  # (Cm,NT)

        # temporal conv `b` (no bias), then +1.
        stack_taps(z, zstk_ref, K1, pad1, Cp1, Cm)
        o_ref[0, :, :] = jnp.dot(wbf_ref[...], zstk_ref[...],
                                 preferred_element_type=f32) + 1.0    # (C, NT)


def _choose_hw_tile(HW, bytes_per_hw_col, max_tile_bytes=8 << 20):
    """Largest HW tile (multiple of 128, or full extent) that divides HW, fits
    a modest per-step byte budget, and gives >= 2 pipeline steps when HW
    allows it so the x DMA overlaps compute."""
    if HW % 128 != 0:
        # TODO(synk): non-128-multiple H*W falls back to one unpipelined step.
        return HW
    nblk = HW // 128
    tblk = max(1, nblk // 2)                 # >= 2 steps whenever possible
    while tblk > 1 and (nblk % tblk != 0
                        or tblk * 128 * bytes_per_hw_col > max_tile_bytes):
        tblk -= 1
    return tblk * 128


def route_func_mlp(x, params, *, batch_chunks=1, hw_tile=None):
    """x: (N, C, T, H, W) -> (N, C, T, 1, 1) float32 (eval-mode BatchNorm).

    batch_chunks: split the batch over a "parallel" grid axis (set 2 on v7x to
    use both TensorCores); 1 is best on single-TC v5e/v6e.
    """
    N, C, T, H, W = x.shape
    wg, bg = params["wg"], params["bg"]
    wa, ba = params["wa"], params["ba"]
    bn_scale, bn_shift = params["bn_scale"], params["bn_shift"]
    wb = params["wb"]
    K0, Cm = wa.shape[0], wa.shape[1]
    K1 = wb.shape[0]
    HW = H * W
    assert K0 % 2 == 1 and K1 % 2 == 1, "odd temporal kernels expected"
    assert N % batch_chunks == 0
    Nc = N // batch_chunks                   # samples per batch chunk
    NTc = Nc * T                             # lane width per chunk
    bf16, f32 = jnp.bfloat16, jnp.float32

    if hw_tile is None:
        hw_tile = _choose_hw_tile(HW, Nc * C * T * x.dtype.itemsize)
    assert HW % hw_tile == 0
    n_hw = HW // hw_tile

    # x keeps its native dtype; the mean is accumulated in f32 in-kernel.
    x4 = x.reshape(N, C, T, HW)

    # Tap-fused conv weights, 16-row aligned (bf16 sublane packing), with the
    # eval-mode BatchNorm scale/shift and conv-a bias folded in.
    Cp0 = -(-C // 16) * 16
    Cp1 = -(-Cm // 16) * 16
    waf = jnp.transpose(wa, (1, 0, 2)) * bn_scale[:, :, None]     # (Cm, K0, C)
    waf = jnp.pad(waf, ((0, 0), (0, 0), (0, Cp0 - C)))
    waf = waf.reshape(Cm, K0 * Cp0).astype(bf16)
    bab = (bn_scale * ba + bn_shift).astype(f32)                  # (Cm, 1)
    wbf = jnp.pad(jnp.transpose(wb, (1, 0, 2)),                   # (C, K1, Cm)
                  ((0, 0), (0, 0), (0, Cp1 - Cm)))
    wbf = wbf.reshape(C, K1 * Cp1).astype(bf16)
    wg16 = wg.astype(bf16)
    bg32 = bg.astype(f32)

    # Per-sample temporal-mean (reduce) and 0/1 broadcast matrices for `g`.
    eye = jnp.eye(Nc, dtype=f32)
    ones_t = jnp.ones((T, 1), f32)
    r_avg = jnp.kron(eye, ones_t / T).astype(bf16)                # (Nc*T, Nc)
    bcast = jnp.kron(eye, ones_t.T).astype(bf16)                  # (Nc, Nc*T)

    kernel = functools.partial(route_func_kernel, K0=K0, K1=K1, T=T, HW=HW)

    out = pl.pallas_call(
        kernel,
        out_shape=jax.ShapeDtypeStruct((batch_chunks, C, NTc), f32),
        grid=(batch_chunks, n_hw),
        in_specs=[
            pl.BlockSpec((Nc, C, T, hw_tile), lambda i, h: (i, 0, 0, h)),
            pl.BlockSpec((NTc, Nc), lambda i, h: (0, 0)),
            pl.BlockSpec((Nc, NTc), lambda i, h: (0, 0)),
            pl.BlockSpec((C, C), lambda i, h: (0, 0)),
            pl.BlockSpec((C, 1), lambda i, h: (0, 0)),
            pl.BlockSpec((Cm, K0 * Cp0), lambda i, h: (0, 0)),
            pl.BlockSpec((Cm, 1), lambda i, h: (0, 0)),
            pl.BlockSpec((C, K1 * Cp1), lambda i, h: (0, 0)),
        ],
        out_specs=pl.BlockSpec((1, C, NTc), lambda i, h: (i, 0, 0)),
        scratch_shapes=[
            pltpu.VMEM((Nc, C, T), f32),          # pooled spatial-sum accum
            pltpu.VMEM((K0 * Cp0, NTc), bf16),    # tap-stacked shifted y
            pltpu.VMEM((K1 * Cp1, NTc), bf16),    # tap-stacked shifted z
        ],
        compiler_params=pltpu.CompilerParams(
            dimension_semantics=("parallel", "arbitrary"),
            vmem_limit_bytes=32 * 1024 * 1024),
    )(x4, r_avg, bcast, wg16, bg32, waf, bab, wbf)

    # (chunks, C, Nc*T) lane-dense kernel output -> (N, C, T, 1, 1).
    out = out.reshape(batch_chunks, C, Nc, T).transpose(0, 2, 1, 3)
    return out.reshape(N, C, T, 1, 1)


def ref_forward(x, params):
    """Pure-JAX reference mirroring the PyTorch forward (eval-mode BN)."""
    wg, bg = params["wg"], params["bg"]
    wa, ba = params["wa"], params["ba"]
    bn_scale, bn_shift = params["bn_scale"], params["bn_shift"]
    wb = params["wb"]
    N, C, T, H, W = x.shape
    K0, Cm = wa.shape[0], wa.shape[1]
    K1 = wb.shape[0]
    hp = jax.lax.Precision.HIGHEST

    pooled = x.astype(jnp.float32).mean(axis=(3, 4))               # (N, C, T)
    gp = pooled.mean(axis=2)                                       # (N, C)
    gout = jnp.einsum("nc,oc->no", gp, wg, precision=hp) + bg[:, 0]
    y = pooled + gout[:, :, None]

    pad0 = K0 // 2
    ypad = jnp.pad(y, ((0, 0), (0, 0), (pad0, pad0)))
    a = jnp.zeros((N, Cm, T), jnp.float32)
    for dk in range(K0):
        a = a + jnp.einsum("oi,nit->not", wa[dk], ypad[:, :, dk:dk + T],
                           precision=hp)
    a = a + ba[None, :, 0, None]
    z = jnp.maximum(a * bn_scale[None, :, 0, None] + bn_shift[None, :, 0, None],
                    0.0)

    pad1 = K1 // 2
    zpad = jnp.pad(z, ((0, 0), (0, 0), (pad1, pad1)))
    b = jnp.zeros((N, C, T), jnp.float32)
    for dk in range(K1):
        b = b + jnp.einsum("oi,nit->not", wb[dk], zpad[:, :, dk:dk + T],
                           precision=hp)
    return (b + 1.0).reshape(N, C, T, 1, 1)


if __name__ == "__main__":
    # Small shapes consistent with the module: c_in=8, ratio=4, kernels=[3,3].
    N, C, T, H, W = 2, 8, 8, 16, 16
    ratio = 4
    kernels = (3, 3)
    Cm = C // ratio
    bn_eps = 1e-5

    key = jax.random.PRNGKey(0)
    ks = jax.random.split(key, 10)
    x = jax.random.normal(ks[0], (N, C, T, H, W), jnp.float32)

    # Deterministic synthetic parameters (shapes per RouteFuncMLP.__init__).
    wg = 0.2 * jax.random.normal(ks[1], (C, C), jnp.float32)       # g: C->C 1x1x1
    bg = 0.1 * jax.random.normal(ks[2], (C, 1), jnp.float32)
    wa = 0.2 * jax.random.normal(ks[3], (kernels[0], Cm, C), jnp.float32)
    ba = 0.1 * jax.random.normal(ks[4], (Cm, 1), jnp.float32)
    gamma = 1.0 + 0.1 * jax.random.normal(ks[5], (Cm, 1), jnp.float32)
    beta = 0.1 * jax.random.normal(ks[6], (Cm, 1), jnp.float32)
    run_mean = 0.1 * jax.random.normal(ks[7], (Cm, 1), jnp.float32)
    run_var = jnp.abs(jax.random.normal(ks[8], (Cm, 1), jnp.float32)) + 0.5
    bn_scale = gamma / jnp.sqrt(run_var + bn_eps)
    bn_shift = beta - run_mean * bn_scale
    # NOTE: the PyTorch module zero-inits b.weight (output would be all 1s);
    # a nonzero deterministic init is used here so the conv-b path is tested.
    wb = 0.2 * jax.random.normal(ks[9], (kernels[1], C, Cm), jnp.float32)

    params = dict(wg=wg, bg=bg, wa=wa, ba=ba,
                  bn_scale=bn_scale, bn_shift=bn_shift, wb=wb)

    ref = ref_forward(x, params)

    # Single-chunk path (best on single-TC v5e/v6e).
    out1 = route_func_mlp(x, params, batch_chunks=1)
    jax.block_until_ready(out1)
    assert out1.shape == (N, C, T, 1, 1), out1.shape
    assert jnp.allclose(out1, ref, atol=2e-2, rtol=2e-2), \
        f"max_err={float(jnp.max(jnp.abs(out1 - ref)))}"

    # Chunked path (legal (batch_chunks, C, Nc*T) output; both TCs on v7x).
    out2 = route_func_mlp(x, params, batch_chunks=2)
    jax.block_until_ready(out2)
    assert out2.shape == (N, C, T, 1, 1), out2.shape
    assert jnp.allclose(out2, ref, atol=2e-2, rtol=2e-2), \
        f"max_err={float(jnp.max(jnp.abs(out2 - ref)))}"

    print("KERNEL_OK")
</pallas_src>

<mosaic_0001>
module attributes {stable_mosaic.version = 11 : i64} {
  func.func @route_func_kernel(%arg0: i32, %arg1: i32, %arg2: memref<2x8x8x128xf32, #tpu.memory_space<vmem>>, %arg3: memref<16x2xbf16, #tpu.memory_space<vmem>>, %arg4: memref<2x16xbf16, #tpu.memory_space<vmem>>, %arg5: memref<8x8xbf16, #tpu.memory_space<vmem>>, %arg6: memref<8x1xf32, #tpu.memory_space<vmem>>, %arg7: memref<2x48xbf16, #tpu.memory_space<vmem>>, %arg8: memref<2x1xf32, #tpu.memory_space<vmem>>, %arg9: memref<8x48xbf16, #tpu.memory_space<vmem>>, %arg10: memref<1x8x16xf32, #tpu.memory_space<vmem>>, %arg11: memref<2x8x8xf32, #tpu.memory_space<vmem>>, %arg12: memref<48x16xbf16, #tpu.memory_space<vmem>>, %arg13: memref<48x16xbf16, #tpu.memory_space<vmem>>) attributes {dimension_semantics = [#tpu.dimension_semantics<parallel>, #tpu.dimension_semantics<arbitrary>], iteration_bounds = array<i64: 1, 2>, scalar_prefetch = 0 : i64, scratch_operands = 3 : i64, tpu.core_type = #tpu.core_type<tc>, window_params = [{transform_indices = @transform_0, window_bounds = array<i64: 2, 8, 8, 128>}, {pipeline_mode = #tpu.pipeline_mode<synchronous>, transform_indices = @transform_1, window_bounds = array<i64: 16, 2>}, {pipeline_mode = #tpu.pipeline_mode<synchronous>, transform_indices = @transform_2, window_bounds = array<i64: 2, 16>}, {pipeline_mode = #tpu.pipeline_mode<synchronous>, transform_indices = @transform_3, window_bounds = array<i64: 8, 8>}, {pipeline_mode = #tpu.pipeline_mode<synchronous>, transform_indices = @transform_4, window_bounds = array<i64: 8, 1>}, {pipeline_mode = #tpu.pipeline_mode<synchronous>, transform_indices = @transform_5, window_bounds = array<i64: 2, 48>}, {pipeline_mode = #tpu.pipeline_mode<synchronous>, transform_indices = @transform_6, window_bounds = array<i64: 2, 1>}, {pipeline_mode = #tpu.pipeline_mode<synchronous>, transform_indices = @transform_7, window_bounds = array<i64: 8, 48>}, {transform_indices = @transform_8, window_bounds = array<i64: 1, 8, 16>}]} {
    %c0_i32 = arith.constant 0 : i32
    %0 = arith.cmpi eq, %arg1, %c0_i32 : i32
    %1 = arith.extui %0 : i1 to i32
    %c0_i32_0 = arith.constant 0 : i32
    %2 = arith.cmpi ne, %1, %c0_i32_0 : i32
    scf.if %2 {
      %cst_11 = arith.constant 0.000000e+00 : f32
      %11 = vector.broadcast %cst_11 : f32 to vector<2x8x8xf32>
      %c0_12 = arith.constant 0 : index
      %c0_13 = arith.constant 0 : index
      %c0_14 = arith.constant 0 : index
      %12 = vector.load %arg11[%c0_12, %c0_13, %c0_14] : memref<2x8x8xf32, #tpu.memory_space<vmem>>, vector<2x8x8xf32>
      tpu.vector_store %arg11[%c0_12, %c0_13, %c0_14], %11 {strides = array<i32>} : memref<2x8x8xf32, #tpu.memory_space<vmem>>, vector<2x8x8xf32>,
      %cst_15 = arith.constant 0.000000e+00 : bf16
      %13 = vector.broadcast %cst_15 : bf16 to vector<48x16xbf16>
      %c0_16 = arith.constant 0 : index
      %c0_17 = arith.constant 0 : index
      %14 = vector.load %arg12[%c0_16, %c0_17] : memref<48x16xbf16, #tpu.memory_space<vmem>>, vector<48x16xbf16>
      tpu.vector_store %arg12[%c0_16, %c0_17], %13 {strides = array<i32>} : memref<48x16xbf16, #tpu.memory_space<vmem>>, vector<48x16xbf16>,
      %cst_18 = arith.constant 0.000000e+00 : bf16
      %15 = vector.broadcast %cst_18 : bf16 to vector<48x16xbf16>
      %c0_19 = arith.constant 0 : index
      %c0_20 = arith.constant 0 : index
      %16 = vector.load %arg13[%c0_19, %c0_20] : memref<48x16xbf16, #tpu.memory_space<vmem>>, vector<48x16xbf16>
      tpu.vector_store %arg13[%c0_19, %c0_20], %15 {strides = array<i32>} : memref<48x16xbf16, #tpu.memory_space<vmem>>, vector<48x16xbf16>,
    } else {
    }
    %c0 = arith.constant 0 : index
    %c0_1 = arith.constant 0 : index
    %c0_2 = arith.constant 0 : index
    %3 = vector.load %arg11[%c0, %c0_1, %c0_2] : memref<2x8x8xf32, #tpu.memory_space<vmem>>, vector<2x8x8xf32>
    %c0_3 = arith.constant 0 : index
    %c0_4 = arith.constant 0 : index
    %c0_5 = arith.constant 0 : index
    %c0_6 = arith.constant 0 : index
    %4 = vector.load %arg2[%c0_3, %c0_4, %c0_5, %c0_6] : memref<2x8x8x128xf32, #tpu.memory_space<vmem>>, vector<2x8x8x128xf32>
    %cst = arith.constant dense<0.000000e+00> : vector<2x8x8xf32>
    %5 = vector.multi_reduction <add>, %4, %cst [3] : vector<2x8x8x128xf32> to vector<2x8x8xf32>
    %6 = arith.addf %3, %5 : vector<2x8x8xf32>
    %c0_7 = arith.constant 0 : index
    %c0_8 = arith.constant 0 : index
    %c0_9 = arith.constant 0 : index
    %7 = vector.load %arg11[%c0_7, %c0_8, %c0_9] : memref<2x8x8xf32, #tpu.memory_space<vmem>>, vector<2x8x8xf32>
    tpu.vector_store %arg11[%c0_7, %c0_8, %c0_9], %6 {strides = array<i32>} : memref<2x8x8xf32, #tpu.memory_space<vmem>>, vector<2x8x8xf32>,
    %c1_i32 = arith.constant 1 : i32
    %8 = arith.cmpi eq, %arg1, %c1_i32 : i32
    %9 = arith.extui %8 : i1 to i32
    %c0_i32_10 = arith.constant 0 : i32
    %10 = arith.cmpi ne, %9, %c0_i32_10 : i32
    scf.if %10 {
      %c0_11 = arith.constant 0 : index
      %c0_12 = arith.constant 0 : index
      %c0_13 = arith.constant 0 : index
      %11 = vector.load %arg11[%c0_11, %c0_12, %c0_13] : memref<2x8x8xf32, #tpu.memory_space<vmem>>, vector<2x8x8xf32>
      %cst_14 = arith.constant 3.906250e-03 : f32
      %12 = vector.broadcast %cst_14 : f32 to vector<2x8x8xf32>
      %13 = arith.mulf %11, %12 : vector<2x8x8xf32>
      %14 = vector.extract_strided_slice %13 {offsets = [0, 0, 0], sizes = [1, 8, 8], strides = [1, 1, 1]} : vector<2x8x8xf32> to vector<1x8x8xf32>
      %15 = vector.shape_cast %14 : vector<1x8x8xf32> to vector<8x8xf32>
      %16 = vector.extract_strided_slice %13 {offsets = [1, 0, 0], sizes = [1, 8, 8], strides = [1, 1, 1]} : vector<2x8x8xf32> to vector<1x8x8xf32>
      %17 = vector.shape_cast %16 : vector<1x8x8xf32> to vector<8x8xf32>
      %18 = tpu.concatenate %15, %17 in 1 : vector<8x8xf32>, vector<8x8xf32> -> vector<8x16xf32>
      %19 = arith.truncf %18 : vector<8x16xf32> to vector<8x16xbf16>
      %c0_15 = arith.constant 0 : index
      %c0_16 = arith.constant 0 : index
      %20 = vector.load %arg3[%c0_15, %c0_16] : memref<16x2xbf16, #tpu.memory_space<vmem>>, vector<16x2xbf16>
      %cst_17 = arith.constant dense<0.000000e+00> : vector<8x2xf32>
      %21 = tpu.matmul %19, %20, %cst_17 {dimension_numbers = #tpu.dot_dimension_numbers<[1], [0], [0], [1], [0, 0, 1, 1], [], []>} : vector<8x16xbf16>, vector<16x2xbf16>, vector<8x2xf32> -> vector<8x2xf32>
      %c0_18 = arith.constant 0 : index
      %c0_19 = arith.constant 0 : index
      %22 = vector.load %arg5[%c0_18, %c0_19] : memref<8x8xbf16, #tpu.memory_space<vmem>>, vector<8x8xbf16>
      %23 = arith.truncf %21 : vector<8x2xf32> to vector<8x2xbf16>
      %cst_20 = arith.constant dense<0.000000e+00> : vector<8x2xf32>
      %24 = tpu.matmul %22, %23, %cst_20 {dimension_numbers = #tpu.dot_dimension_numbers<[1], [0], [0], [1], [0, 0, 1, 1], [], []>} : vector<8x8xbf16>, vector<8x2xbf16>, vector<8x2xf32> -> vector<8x2xf32>
      %25 = arith.truncf %24 : vector<8x2xf32> to vector<8x2xbf16>
      %c0_21 = arith.constant 0 : index
      %c0_22 = arith.constant 0 : index
      %26 = vector.load %arg4[%c0_21, %c0_22] : memref<2x16xbf16, #tpu.memory_space<vmem>>, vector<2x16xbf16>
      %cst_23 = arith.constant dense<0.000000e+00> : vector<8x16xf32>
      %27 = tpu.matmul %25, %26, %cst_23 {dimension_numbers = #tpu.dot_dimension_numbers<[1], [0], [0], [1], [0, 0, 1, 1], [], []>} : vector<8x2xbf16>, vector<2x16xbf16>, vector<8x16xf32> -> vector<8x16xf32>
      %28 = arith.addf %18, %27 : vector<8x16xf32>
      %c0_24 = arith.constant 0 : index
      %c0_25 = arith.constant 0 : index
      %29 = vector.load %arg6[%c0_24, %c0_25] : memref<8x1xf32, #tpu.memory_space<vmem>>, vector<8x1xf32>
      %30 = vector.broadcast %29 : vector<8x1xf32> to vector<8x16xf32>
      %31 = arith.addf %28, %30 : vector<8x16xf32>
      %32 = tpu.iota {dimensions = array<i32: 1>} : vector<8x16xi32>
      %c8_i32 = arith.constant 8 : i32
      %c0_i32_26 = arith.constant 0 : i32
      %33 = arith.cmpi eq, %c8_i32, %c0_i32_26 : i32
      %c1_i32_27 = arith.constant 1 : i32
      %34 = arith.select %33, %c1_i32_27, %c8_i32 : i32
      %35 = vector.broadcast %34 : i32 to vector<8x16xi32>
      %36 = arith.remsi %32, %35 : vector<8x16xi32>
      %c0_i32_28 = arith.constant 0 : i32
      %37 = vector.broadcast %c0_i32_28 : i32 to vector<8x16xi32>
      %38 = arith.cmpi ne, %36, %37 : vector<8x16xi32>
      %c0_i32_29 = arith.constant 0 : i32
      %39 = vector.broadcast %c0_i32_29 : i32 to vector<8x16xi32>
      %40 = arith.cmpi slt, %36, %39 : vector<8x16xi32>
      %c0_i32_30 = arith.constant 0 : i32
      %41 = arith.cmpi slt, %34, %c0_i32_30 : i32
      %42 = vector.broadcast %41 : i1 to vector<8x16xi1>
      %43 = vector.broadcast %42 : vector<8x16xi1> to vector<8x16xi1>
      %44 = arith.xori %40, %43 : vector<8x16xi1>
      %45 = arith.andi %44, %38 : vector<8x16xi1>
      %46 = vector.broadcast %34 : i32 to vector<8x16xi32>
      %47 = arith.addi %36, %46 : vector<8x16xi32>
      %48 = arith.select %45, %47, %36 : vector<8x16xi1>, vector<8x16xi32>
      %49 = vector.extract_strided_slice %31 {offsets = [0, 15], sizes = [8, 1], strides = [1, 1]} : vector<8x16xf32> to vector<8x1xf32>
      %50 = vector.extract_strided_slice %31 {offsets = [0, 0], sizes = [8, 15], strides = [1, 1]} : vector<8x16xf32> to vector<8x15xf32>
      %51 = tpu.concatenate %49, %50 in 1 : vector<8x1xf32>, vector<8x15xf32> -> vector<8x16xf32>
      %c1_i32_31 = arith.constant 1 : i32
      %52 = vector.broadcast %c1_i32_31 : i32 to vector<8x16xi32>
      %53 = arith.cmpi sge, %48, %52 : vector<8x16xi32>
      %c8_i32_32 = arith.constant 8 : i32
      %54 = vector.broadcast %c8_i32_32 : i32 to vector<8x16xi32>
      %55 = arith.cmpi slt, %48, %54 : vector<8x16xi32>
      %56 = arith.andi %53, %55 : vector<8x16xi1>
      %cst_33 = arith.constant 0.000000e+00 : f32
      %57 = vector.broadcast %cst_33 : f32 to vector<8x16xf32>
      %58 = arith.select %56, %51, %57 : vector<8x16xi1>, vector<8x16xf32>
      %59 = arith.truncf %58 : vector<8x16xf32> to vector<8x16xbf16>
      %c0_34 = arith.constant 0 : index
      %c0_35 = arith.constant 0 : index
      %60 = vector.load %arg12[%c0_34, %c0_35] : memref<48x16xbf16, #tpu.memory_space<vmem>>, vector<8x16xbf16>
      tpu.vector_store %arg12[%c0_34, %c0_35], %59 {strides = array<i32>} : memref<48x16xbf16, #tpu.memory_space<vmem>>, vector<8x16xbf16>,
      %61 = arith.truncf %31 : vector<8x16xf32> to vector<8x16xbf16>
      %c16 = arith.constant 16 : index
      %c0_36 = arith.constant 0 : index
      %62 = vector.load %arg12[%c16, %c0_36] : memref<48x16xbf16, #tpu.memory_space<vmem>>, vector<8x16xbf16>
      tpu.vector_store %arg12[%c16, %c0_36], %61 {strides = array<i32>} : memref<48x16xbf16, #tpu.memory_space<vmem>>, vector<8x16xbf16>,
      %63 = vector.extract_strided_slice %31 {offsets = [0, 1], sizes = [8, 15], strides = [1, 1]} : vector<8x16xf32> to vector<8x15xf32>
      %64 = vector.extract_strided_slice %31 {offsets = [0, 0], sizes = [8, 1], strides = [1, 1]} : vector<8x16xf32> to vector<8x1xf32>
      %65 = tpu.concatenate %63, %64 in 1 : vector<8x15xf32>, vector<8x1xf32> -> vector<8x16xf32>
      %c0_i32_37 = arith.constant 0 : i32
      %66 = vector.broadcast %c0_i32_37 : i32 to vector<8x16xi32>
      %67 = arith.cmpi sge, %48, %66 : vector<8x16xi32>
      %c7_i32 = arith.constant 7 : i32
      %68 = vector.broadcast %c7_i32 : i32 to vector<8x16xi32>
      %69 = arith.cmpi slt, %48, %68 : vector<8x16xi32>
      %70 = arith.andi %67, %69 : vector<8x16xi1>
      %cst_38 = arith.constant 0.000000e+00 : f32
      %71 = vector.broadcast %cst_38 : f32 to vector<8x16xf32>
      %72 = arith.select %70, %65, %71 : vector<8x16xi1>, vector<8x16xf32>
      %73 = arith.truncf %72 : vector<8x16xf32> to vector<8x16xbf16>
      %c32 = arith.constant 32 : index
      %c0_39 = arith.constant 0 : index
      %74 = vector.load %arg12[%c32, %c0_39] : memref<48x16xbf16, #tpu.memory_space<vmem>>, vector<8x16xbf16>
      tpu.vector_store %arg12[%c32, %c0_39], %73 {strides = array<i32>} : memref<48x16xbf16, #tpu.memory_space<vmem>>, vector<8x16xbf16>,
      %c0_40 = arith.constant 0 : index
      %c0_41 = arith.constant 0 : index
      %75 = vector.load %arg7[%c0_40, %c0_41] : memref<2x48xbf16, #tpu.memory_space<vmem>>, vector<2x48xbf16>
      %c0_42 = arith.constant 0 : index
      %c0_43 = arith.constant 0 : index
      %76 = vector.load %arg12[%c0_42, %c0_43] : memref<48x16xbf16, #tpu.memory_space<vmem>>, vector<48x16xbf16>
      %cst_44 = arith.constant dense<0.000000e+00> : vector<2x16xf32>
      %77 = tpu.matmul %75, %76, %cst_44 {dimension_numbers = #tpu.dot_dimension_numbers<[1], [0], [0], [1], [0, 0, 1, 1], [], []>} : vector<2x48xbf16>, vector<48x16xbf16>, vector<2x16xf32> -> vector<2x16xf32>
      %c0_45 = arith.constant 0 : index
      %c0_46 = arith.constant 0 : index
      %78 = vector.load %arg8[%c0_45, %c0_46] : memref<2x1xf32, #tpu.memory_space<vmem>>, vector<2x1xf32>
      %79 = vector.broadcast %78 : vector<2x1xf32> to vector<2x16xf32>
      %80 = arith.addf %77, %79 : vector<2x16xf32>
      %cst_47 = arith.constant 0.000000e+00 : f32
      %81 = vector.broadcast %cst_47 : f32 to vector<2x16xf32>
      %82 = arith.maximumf %80, %81 : vector<2x16xf32>
      %83 = tpu.iota {dimensions = array<i32: 1>} : vector<2x16xi32>
      %c8_i32_48 = arith.constant 8 : i32
      %c0_i32_49 = arith.constant 0 : i32
      %84 = arith.cmpi eq, %c8_i32_48, %c0_i32_49 : i32
      %c1_i32_50 = arith.constant 1 : i32
      %85 = arith.select %84, %c1_i32_50, %c8_i32_48 : i32
      %86 = vector.broadcast %85 : i32 to vector<2x16xi32>
      %87 = arith.remsi %83, %86 : vector<2x16xi32>
      %c0_i32_51 = arith.constant 0 : i32
      %88 = vector.broadcast %c0_i32_51 : i32 to vector<2x16xi32>
      %89 = arith.cmpi ne, %87, %88 : vector<2x16xi32>
      %c0_i32_52 = arith.constant 0 : i32
      %90 = vector.broadcast %c0_i32_52 : i32 to vector<2x16xi32>
      %91 = arith.cmpi slt, %87, %90 : vector<2x16xi32>
      %c0_i32_53 = arith.constant 0 : i32
      %92 = arith.cmpi slt, %85, %c0_i32_53 : i32
      %93 = vector.broadcast %92 : i1 to vector<2x16xi1>
      %94 = vector.broadcast %93 : vector<2x16xi1> to vector<2x16xi1>
      %95 = arith.xori %91, %94 : vector<2x16xi1>
      %96 = arith.andi %95, %89 : vector<2x16xi1>
      %97 = vector.broadcast %85 : i32 to vector<2x16xi32>
      %98 = arith.addi %87, %97 : vector<2x16xi32>
      %99 = arith.select %96, %98, %87 : vector<2x16xi1>, vector<2x16xi32>
      %100 = vector.extract_strided_slice %82 {offsets = [0, 15], sizes = [2, 1], strides = [1, 1]} : vector<2x16xf32> to vector<2x1xf32>
      %101 = vector.extract_strided_slice %82 {offsets = [0, 0], sizes = [2, 15], strides = [1, 1]} : vector<2x16xf32> to vector<2x15xf32>
      %102 = tpu.concatenate %100, %101 in 1 : vector<2x1xf32>, vector<2x15xf32> -> vector<2x16xf32>
      %c1_i32_54 = arith.constant 1 : i32
      %103 = vector.broadcast %c1_i32_54 : i32 to vector<2x16xi32>
      %104 = arith.cmpi sge, %99, %103 : vector<2x16xi32>
      %c8_i32_55 = arith.constant 8 : i32
      %105 = vector.broadcast %c8_i32_55 : i32 to vector<2x16xi32>
      %106 = arith.cmpi slt, %99, %105 : vector<2x16xi32>
      %107 = arith.andi %104, %106 : vector<2x16xi1>
      %cst_56 = arith.constant 0.000000e+00 : f32
      %108 = vector.broadcast %cst_56 : f32 to vector<2x16xf32>
      %109 = arith.select %107, %102, %108 : vector<2x16xi1>, vector<2x16xf32>
      %110 = arith.truncf %109 : vector<2x16xf32> to vector<2x16xbf16>
      %c0_57 = arith.constant 0 : index
      %c0_58 = arith.constant 0 : index
      %111 = vector.load %arg13[%c0_57, %c0_58] : memref<48x16xbf16, #tpu.memory_space<vmem>>, vector<2x16xbf16>
      tpu.vector_store %arg13[%c0_57, %c0_58], %110 {strides = array<i32>} : memref<48x16xbf16, #tpu.memory_space<vmem>>, vector<2x16xbf16>,
      %112 = arith.truncf %82 : vector<2x16xf32> to vector<2x16xbf16>
      %c16_59 = arith.constant 16 : index
      %c0_60 = arith.constant 0 : index
      %113 = vector.load %arg13[%c16_59, %c0_60] : memref<48x16xbf16, #tpu.memory_space<vmem>>, vector<2x16xbf16>
      tpu.vector_store %arg13[%c16_59, %c0_60], %112 {strides = array<i32>} : memref<48x16xbf16, #tpu.memory_space<vmem>>, vector<2x16xbf16>,
      %114 = vector.extract_strided_slice %82 {offsets = [0, 1], sizes = [2, 15], strides = [1, 1]} : vector<2x16xf32> to vector<2x15xf32>
      %115 = vector.extract_strided_slice %82 {offsets = [0, 0], sizes = [2, 1], strides = [1, 1]} : vector<2x16xf32> to vector<2x1xf32>
      %116 = tpu.concatenate %114, %115 in 1 : vector<2x15xf32>, vector<2x1xf32> -> vector<2x16xf32>
      %c0_i32_61 = arith.constant 0 : i32
      %117 = vector.broadcast %c0_i32_61 : i32 to vector<2x16xi32>
      %118 = arith.cmpi sge, %99, %117 : vector<2x16xi32>
      %c7_i32_62 = arith.constant 7 : i32
      %119 = vector.broadcast %c7_i32_62 : i32 to vector<2x16xi32>
      %120 = arith.cmpi slt, %99, %119 : vector<2x16xi32>
      %121 = arith.andi %118, %120 : vector<2x16xi1>
      %cst_63 = arith.constant 0.000000e+00 : f32
      %122 = vector.broadcast %cst_63 : f32 to vector<2x16xf32>
      %123 = arith.select %121, %116, %122 : vector<2x16xi1>, vector<2x16xf32>
      %124 = arith.truncf %123 : vector<2x16xf32> to vector<2x16xbf16>
      %c32_64 = arith.constant 32 : index
      %c0_65 = arith.constant 0 : index
      %125 = vector.load %arg13[%c32_64, %c0_65] : memref<48x16xbf16, #tpu.memory_space<vmem>>, vector<2x16xbf16>
      tpu.vector_store %arg13[%c32_64, %c0_65], %124 {strides = array<i32>} : memref<48x16xbf16, #tpu.memory_space<vmem>>, vector<2x16xbf16>,
      %c0_66 = arith.constant 0 : index
      %c0_67 = arith.constant 0 : index
      %126 = vector.load %arg9[%c0_66, %c0_67] : memref<8x48xbf16, #tpu.memory_space<vmem>>, vector<8x48xbf16>
      %c0_68 = arith.constant 0 : index
      %c0_69 = arith.constant 0 : index
      %127 = vector.load %arg13[%c0_68, %c0_69] : memref<48x16xbf16, #tpu.memory_space<vmem>>, vector<48x16xbf16>
      %cst_70 = arith.constant dense<0.000000e+00> : vector<8x16xf32>
      %128 = tpu.matmul %126, %127, %cst_70 {dimension_numbers = #tpu.dot_dimension_numbers<[1], [0], [0], [1], [0, 0, 1, 1], [], []>} : vector<8x48xbf16>, vector<48x16xbf16>, vector<8x16xf32> -> vector<8x16xf32>
      %cst_71 = arith.constant 1.000000e+00 : f32
      %129 = vector.broadcast %cst_71 : f32 to vector<8x16xf32>
      %130 = arith.addf %128, %129 : vector<8x16xf32>
      %c0_72 = arith.constant 0 : index
      %c0_73 = arith.constant 0 : index
      %c0_74 = arith.constant 0 : index
      %131 = vector.load %arg10[%c0_72, %c0_73, %c0_74] : memref<1x8x16xf32, #tpu.memory_space<vmem>>, vector<1x8x16xf32>
      %132 = vector.shape_cast %131 : vector<1x8x16xf32> to vector<8x16xf32>
      %133 = vector.shape_cast %130 : vector<8x16xf32> to vector<1x8x16xf32>
      tpu.vector_store %arg10[%c0_72, %c0_73, %c0_74], %133 {strides = array<i32>} : memref<1x8x16xf32, #tpu.memory_space<vmem>>, vector<1x8x16xf32>,
    } else {
    }
    return
  }
  func.func @transform_0(%arg0: i32, %arg1: i32) -> (i32, i32, i32, i32) {
    %c0_i32 = arith.constant 0 : i32
    %c0_i32_0 = arith.constant 0 : i32
    %c0_i32_1 = arith.constant 0 : i32
    return %arg0, %c0_i32, %c0_i32_0, %arg1 : i32, i32, i32, i32
  }
  func.func @transform_1(%arg0: i32, %arg1: i32) -> (i32, i32) {
    %c0_i32 = arith.constant 0 : i32
    %c0_i32_0 = arith.constant 0 : i32
    %c0_i32_1 = arith.constant 0 : i32
    return %c0_i32, %c0_i32_0 : i32, i32
  }
  func.func @transform_2(%arg0: i32, %arg1: i32) -> (i32, i32) {
    %c0_i32 = arith.constant 0 : i32
    %c0_i32_0 = arith.constant 0 : i32
    %c0_i32_1 = arith.constant 0 : i32
    return %c0_i32, %c0_i32_0 : i32, i32
  }
  func.func @transform_3(%arg0: i32, %arg1: i32) -> (i32, i32) {
    %c0_i32 = arith.constant 0 : i32
    %c0_i32_0 = arith.constant 0 : i32
    %c0_i32_1 = arith.constant 0 : i32
    return %c0_i32, %c0_i32_0 : i32, i32
  }
  func.func @transform_4(%arg0: i32, %arg1: i32) -> (i32, i32) {
    %c0_i32 = arith.constant 0 : i32
    %c0_i32_0 = arith.constant 0 : i32
    %c0_i32_1 = arith.constant 0 : i32
    return %c0_i32, %c0_i32_0 : i32, i32
  }
  func.func @transform_5(%arg0: i32, %arg1: i32) -> (i32, i32) {
    %c0_i32 = arith.constant 0 : i32
    %c0_i32_0 = arith.constant 0 : i32
    %c0_i32_1 = arith.constant 0 : i32
    return %c0_i32, %c0_i32_0 : i32, i32
  }
  func.func @transform_6(%arg0: i32, %arg1: i32) -> (i32, i32) {
    %c0_i32 = arith.constant 0 : i32
    %c0_i32_0 = arith.constant 0 : i32
    %c0_i32_1 = arith.constant 0 : i32
    return %c0_i32, %c0_i32_0 : i32, i32
  }
  func.func @transform_7(%arg0: i32, %arg1: i32) -> (i32, i32) {
    %c0_i32 = arith.constant 0 : i32
    %c0_i32_0 = arith.constant 0 : i32
    %c0_i32_1 = arith.constant 0 : i32
    return %c0_i32, %c0_i32_0 : i32, i32
  }
  func.func @transform_8(%arg0: i32, %arg1: i32) -> (i32, i32, i32) {
    %c0_i32 = arith.constant 0 : i32
    %c0_i32_0 = arith.constant 0 : i32
    %c0_i32_1 = arith.constant 0 : i32
    return %arg0, %c0_i32, %c0_i32_0 : i32, i32, i32
  }
}

</mosaic_0001>

<llo_original>
// kernel: tpu_custom_call.1
$region0: #{tpu_custom_call.1}
  #allocation0 [shape = 'u32[]', space=smem, size = 0x4, offset = 0x4, fixed_abs, tag = 'smem constant byte address 0x4 - core index']
  #allocation1 [shape = 'u32[144,128]{1,0:T(1,128)}', space=vmem, size = 0x12000, scoped, tag = 'internal scratch']
  #allocation2 [shape = 'f32[2,8,8]{2,1,0:T(8,128)}', space=vmem, size = 0x2000, scoped, tag = 'scratch operand']
  #allocation3 [shape = 'bf16[48,16]{1,0:T(16,128)(2,1)}', space=vmem, size = 0x3000, scoped, tag = 'scratch operand']
  #allocation4 [shape = 'bf16[48,16]{1,0:T(16,128)(2,1)}', space=vmem, size = 0x3000, scoped, tag = 'scratch operand']
  %s0 = inlined_call_operand.hbm [shape: f32[2,8,8,256], index: 0, kind: input, shape index: {}]
  %s1 = inlined_call_operand.vmem [shape: bf16[16,2], index: 1, kind: input, shape index: {}]
  %s2 = inlined_call_operand.vmem [shape: bf16[2,16], index: 2, kind: input, shape index: {}]
  %s3 = inlined_call_operand.vmem [shape: bf16[8,8], index: 3, kind: input, shape index: {}]
  %s4 = inlined_call_operand.vmem [shape: f32[8,1], index: 4, kind: input, shape index: {}]
  %s5 = inlined_call_operand.vmem [shape: bf16[2,48], index: 5, kind: input, shape index: {}]
  %s6 = inlined_call_operand.vmem [shape: f32[2,1], index: 6, kind: input, shape index: {}]
  %s7 = inlined_call_operand.vmem [shape: bf16[8,48], index: 7, kind: input, shape index: {}]
  %s8 = inlined_call_operand.hbm [shape: f32[1,8,16], index: 8, kind: output, shape index: {}]
  %s9 = sld [smem:[#allocation0]]
  $region77: #{tpu_custom_call.1} parent=0
    _
  %s11 = ssub.s32 1, %s9
  %s12 = scalar_select 0, %s11, %s9
  $region1: #{tpu_custom_call.1} parent=0
    #allocation5 [shape = 'u8[131072]{0}', space=vmem, size = 0x20000, scoped, tag = 'input window, operand 0']
    #allocation6 [shape = 's32[2]{0}', space=sflag, size = 0x8, scoped, tag = 'scoped memory for tpu_custom_call.1']
    #allocation7 [shape = 's32[2]{0}', space=sflag, size = 0x8, scoped, tag = 'scoped memory for tpu_custom_call.1']
    #allocation8 [shape = 'u8[4096]{0}', space=vmem, size = 0x1000, scoped, tag = 'output window, operand 0, single buffered']
    %13 = vsyncpa [#allocation6], 0
    %s14 = scalar_lea.sflag [#allocation6], 1
    %15 = vsyncpa %s14, 0
    %16 = vsyncpa [#allocation7], 0
    loop: start=0, step=1, limit=4
    $region2: #{tpu_custom_call.1} parent=1 // loop_pre_header
      _
    $region3: #{tpu_custom_call.1} parent=1 // loop_header
      %s18 = sphi 0, %s22
      %p19 = scmp.ge.s32.totalorder %s18, 4
      %s25 = sphi 0, %s37
      %s26 = sphi 0, %s33
      %s27 = sphi 0, %s25
      %s28 = sphi 0, %s26
      %s29 = sphi 0, %s27
      %s30 = sphi 0, %s28
      %s42 = sphi 0, %s44
      %s45 = sphi 0, %s42
      %s46 = sphi 0, %s45
      %s62 = sphi 0, %s46
      %s66 = sphi 0, %s66
      %s68 = sphi 0, %s66
      %s69 = sphi 0, %s68
      %s83 = sphi 0, %s69
      %s87 = sphi 0, %s87
      %s89 = sphi 0, %s87
      %s90 = sphi 0, %s89
      %s104 = sphi 0, %s90
      %s108 = sphi 0, %s108
      %s110 = sphi 0, %s108
      %s111 = sphi 0, %s110
      %s125 = sphi 0, %s111
      %s129 = sphi 0, %s129
      %s131 = sphi 0, %s129
      %s132 = sphi 0, %s131
      %s146 = sphi 0, %s132
      %s150 = sphi 0, %s150
      %s152 = sphi 0, %s150
      %s153 = sphi 0, %s152
      %s167 = sphi 0, %s153
      %s171 = sphi 0, %s171
      %s173 = sphi 0, %s171
      %s174 = sphi 0, %s173
      %s188 = sphi 0, %s174
      %s192 = sphi 0, %s192
      %s194 = sphi 0, %s192
      %s195 = sphi 0, %s194
      %s209 = sphi 0, %s195
      %s215 = sphi 0, %s217
      %s218 = sphi 0, %s215
      %s219 = sphi 0, %s218
      %s235 = sphi 0, %s219
    $region4: #{tpu_custom_call.1} parent=1 // loop_header_branch
      %21 = sbr.rel (%p19) target = $region8
    $region5: #{tpu_custom_call.1} parent=1 // loop_body
      %s23 = ssub.s32 %s18, 1
      %s24 = ssub.s32 %s18, 2
      %s31 = sadd.s32 1, %s26
      %p32 = scmp.ge.s32.totalorder %s31, 2
      %s33 = scalar_select %p32, 0, %s31
      %s34 = sadd.s32 1, %s25
      %s35 = scalar_select %p32, %s34, %s25
      %p36 = scmp.ge.s32.totalorder %s35, 1
      %s37 = scalar_select %p36, 0, %s35
      %s38 = ssub.s32 %s25, %s37
      %s39 = ssub.s32 %s26, %s33
      %s40 = sor.u32 %s38, %s39
      %p41 = scmp.eq.s32.totalorder %s40, 0
      %s43 = sadd.s32 %s42, 1
      %s44 = scalar_select %p41, %s42, %s43
      %p47 = pneg %p41
      %p48 = scmp.eq.s32.totalorder %s18, 1
      %p49 = por %p47, %p48
      %p50 = scmp.ne.s32.totalorder %s42, %s45
      %p51 = scmp.eq.s32.totalorder %s18, 0
      %p52 = por %p50, %p51
      %p53 = scmp.ne.s32.totalorder %s42, %s45
      %p54 = scmp.eq.s32.totalorder %s23, 1
      %p55 = por %p53, %p54
      %p56 = scmp.ne.s32.totalorder %s45, %s46
      %p57 = scmp.eq.s32.totalorder %s23, 0
      %p58 = por %p56, %p57
      %p59 = scmp.ne.s32.totalorder %s45, %s46
      %p60 = scmp.eq.s32.totalorder %s24, 1
      %p61 = por %p59, %p60
      %p63 = scmp.ne.s32.totalorder %s46, %s62
      %p64 = scmp.eq.s32.totalorder %s24, 0
      %p65 = por %p63, %p64
      %s67 = sadd.s32 %s66, 1
      %p70 = scmp.eq.s32.totalorder %s18, 1
      %p71 = scmp.ne.s32.totalorder %s66, %s68
      %p72 = scmp.eq.s32.totalorder %s18, 0
      %p73 = por %p71, %p72
      %p74 = scmp.ne.s32.totalorder %s66, %s68
      %p75 = scmp.eq.s32.totalorder %s23, 1
      %p76 = por %p74, %p75
      %p77 = scmp.ne.s32.totalorder %s68, %s69
      %p78 = scmp.eq.s32.totalorder %s23, 0
      %p79 = por %p77, %p78
      %p80 = scmp.ne.s32.totalorder %s68, %s69
      %p81 = scmp.eq.s32.totalorder %s24, 1
      %p82 = por %p80, %p81
      %p84 = scmp.ne.s32.totalorder %s69, %s83
      %p85 = scmp.eq.s32.totalorder %s24, 0
      %p86 = por %p84, %p85
      %s88 = sadd.s32 %s87, 1
      %p91 = scmp.eq.s32.totalorder %s18, 1
      %p92 = scmp.ne.s32.totalorder %s87, %s89
      %p93 = scmp.eq.s32.totalorder %s18, 0
      %p94 = por %p92, %p93
      %p95 = scmp.ne.s32.totalorder %s87, %s89
      %p96 = scmp.eq.s32.totalorder %s23, 1
      %p97 = por %p95, %p96
      %p98 = scmp.ne.s32.totalorder %s89, %s90
      %p99 = scmp.eq.s32.totalorder %s23, 0
      %p100 = por %p98, %p99
      %p101 = scmp.ne.s32.totalorder %s89, %s90
      %p102 = scmp.eq.s32.totalorder %s24, 1
      %p103 = por %p101, %p102
      %p105 = scmp.ne.s32.totalorder %s90, %s104
      %p106 = scmp.eq.s32.totalorder %s24, 0
      %p107 = por %p105, %p106
      %s109 = sadd.s32 %s108, 1
      %p112 = scmp.eq.s32.totalorder %s18, 1
      %p113 = scmp.ne.s32.totalorder %s108, %s110
      %p114 = scmp.eq.s32.totalorder %s18, 0
      %p115 = por %p113, %p114
      %p116 = scmp.ne.s32.totalorder %s108, %s110
      %p117 = scmp.eq.s32.totalorder %s23, 1
      %p118 = por %p116, %p117
      %p119 = scmp.ne.s32.totalorder %s110, %s111
      %p120 = scmp.eq.s32.totalorder %s23, 0
      %p121 = por %p119, %p120
      %p122 = scmp.ne.s32.totalorder %s110, %s111
      %p123 = scmp.eq.s32.totalorder %s24, 1
      %p124 = por %p122, %p123
      %p126 = scmp.ne.s32.totalorder %s111, %s125
      %p127 = scmp.eq.s32.totalorder %s24, 0
      %p128 = por %p126, %p127
      %s130 = sadd.s32 %s129, 1
      %p133 = scmp.eq.s32.totalorder %s18, 1
      %p134 = scmp.ne.s32.totalorder %s129, %s131
      %p135 = scmp.eq.s32.totalorder %s18, 0
      %p136 = por %p134, %p135
      %p137 = scmp.ne.s32.totalorder %s129, %s131
      %p138 = scmp.eq.s32.totalorder %s23, 1
      %p139 = por %p137, %p138
      %p140 = scmp.ne.s32.totalorder %s131, %s132
      %p141 = scmp.eq.s32.totalorder %s23, 0
      %p142 = por %p140, %p141
      %p143 = scmp.ne.s32.totalorder %s131, %s132
      %p144 = scmp.eq.s32.totalorder %s24, 1
      %p145 = por %p143, %p144
      %p147 = scmp.ne.s32.totalorder %s132, %s146
      %p148 = scmp.eq.s32.totalorder %s24, 0
      %p149 = por %p147, %p148
      %s151 = sadd.s32 %s150, 1
      %p154 = scmp.eq.s32.totalorder %s18, 1
      %p155 = scmp.ne.s32.totalorder %s150, %s152
      %p156 = scmp.eq.s32.totalorder %s18, 0
      %p157 = por %p155, %p156
      %p158 = scmp.ne.s32.totalorder %s150, %s152
      %p159 = scmp.eq.s32.totalorder %s23, 1
      %p160 = por %p158, %p159
      %p161 = scmp.ne.s32.totalorder %s152, %s153
      %p162 = scmp.eq.s32.totalorder %s23, 0
      %p163 = por %p161, %p162
      %p164 = scmp.ne.s32.totalorder %s152, %s153
      %p165 = scmp.eq.s32.totalorder %s24, 1
      %p166 = por %p164, %p165
      %p168 = scmp.ne.s32.totalorder %s153, %s167
      %p169 = scmp.eq.s32.totalorder %s24, 0
      %p170 = por %p168, %p169
      %s172 = sadd.s32 %s171, 1
      %p175 = scmp.eq.s32.totalorder %s18, 1
      %p176 = scmp.ne.s32.totalorder %s171, %s173
      %p177 = scmp.eq.s32.totalorder %s18, 0
      %p178 = por %p176, %p177
      %p179 = scmp.ne.s32.totalorder %s171, %s173
      %p180 = scmp.eq.s32.totalorder %s23, 1
      %p181 = por %p179, %p180
      %p182 = scmp.ne.s32.totalorder %s173, %s174
      %p183 = scmp.eq.s32.totalorder %s23, 0
      %p184 = por %p182, %p183
      %p185 = scmp.ne.s32.totalorder %s173, %s174
      %p186 = scmp.eq.s32.totalorder %s24, 1
      %p187 = por %p185, %p186
      %p189 = scmp.ne.s32.totalorder %s174, %s188
      %p190 = scmp.eq.s32.totalorder %s24, 0
      %p191 = por %p189, %p190
      %s193 = sadd.s32 %s192, 1
      %p196 = scmp.eq.s32.totalorder %s18, 1
      %p197 = scmp.ne.s32.totalorder %s192, %s194
      %p198 = scmp.eq.s32.totalorder %s18, 0
      %p199 = por %p197, %p198
      %p200 = scmp.ne.s32.totalorder %s192, %s194
      %p201 = scmp.eq.s32.totalorder %s23, 1
      %p202 = por %p200, %p201
      %p203 = scmp.ne.s32.totalorder %s194, %s195
      %p204 = scmp.eq.s32.totalorder %s23, 0
      %p205 = por %p203, %p204
      %p206 = scmp.ne.s32.totalorder %s194, %s195
      %p207 = scmp.eq.s32.totalorder %s24, 1
      %p208 = por %p206, %p207
      %p210 = scmp.ne.s32.totalorder %s195, %s209
      %p211 = scmp.eq.s32.totalorder %s24, 0
      %p212 = por %p210, %p211
      %s213 = ssub.s32 %s25, %s37
      %p214 = scmp.eq.s32.totalorder %s213, 0
      %s216 = sadd.s32 %s215, 1
      %s217 = scalar_select %p214, %s215, %s216
      %p220 = pneg %p214
      %p221 = scmp.eq.s32.totalorder %s18, 1
      %p222 = por %p220, %p221
      %p223 = scmp.ne.s32.totalorder %s215, %s218
      %p224 = scmp.eq.s32.totalorder %s18, 0
      %p225 = por %p223, %p224
      %p226 = scmp.ne.s32.totalorder %s215, %s218
      %p227 = scmp.eq.s32.totalorder %s23, 1
      %p228 = por %p226, %p227
      %p229 = scmp.ne.s32.totalorder %s218, %s219
      %p230 = scmp.eq.s32.totalorder %s23, 0
      %p231 = por %p229, %p230
      %p232 = scmp.ne.s32.totalorder %s218, %s219
      %p233 = scmp.eq.s32.totalorder %s24, 1
      %p234 = por %p232, %p233
      %p236 = scmp.ne.s32.totalorder %s219, %s235
      %p237 = scmp.eq.s32.totalorder %s24, 0
      %p238 = por %p236, %p237
      %p239 = scmp.le.s32.totalorder 1, %s18
      %p240 = scmp.lt.s32.totalorder %s18, 3
      %p241 = pnand %p239, %p240
      %p242 = pneg %p241
      // Predicated region
      $region9: #{tpu_custom_call.1} parent=5 // pred_check
        _
      $region10: #{tpu_custom_call.1} parent=5 // pred_check_branch
        %244 = sbr.rel (%p241) target = $region12
      $region11: #{tpu_custom_call.1} parent=5 // pred_region
        %s245 = ssub.s32 %s18, 1
        // Predicated region
        $region13: #{tpu_custom_call.1} parent=11 // pred_check
          %p246 = pneg %p79
        $region14: #{tpu_custom_call.1} parent=11 // pred_check_branch
          %248 = sbr.rel (%p246) target = $region16
        $region15: #{tpu_custom_call.1} parent=11 // pred_region
          _
        $region16: #{tpu_custom_call.1} parent=11 // pred_fallthru
          _
        // Predicated region
        $region17: #{tpu_custom_call.1} parent=11 // pred_check
          %p249 = pneg %p100
        $region18: #{tpu_custom_call.1} parent=11 // pred_check_branch
          %251 = sbr.rel (%p249) target = $region20
        $region19: #{tpu_custom_call.1} parent=11 // pred_region
          _
        $region20: #{tpu_custom_call.1} parent=11 // pred_fallthru
          _
        // Predicated region
        $region21: #{tpu_custom_call.1} parent=11 // pred_check
          %p252 = pneg %p121
        $region22: #{tpu_custom_call.1} parent=11 // pred_check_branch
          %254 = sbr.rel (%p252) target = $region24
        $region23: #{tpu_custom_call.1} parent=11 // pred_region
          _
        $region24: #{tpu_custom_call.1} parent=11 // pred_fallthru
          _
        // Predicated region
        $region25: #{tpu_custom_call.1} parent=11 // pred_check
          %p255 = pneg %p142
        $region26: #{tpu_custom_call.1} parent=11 // pred_check_branch
          %257 = sbr.rel (%p255) target = $region28
        $region27: #{tpu_custom_call.1} parent=11 // pred_region
          _
        $region28: #{tpu_custom_call.1} parent=11 // pred_fallthru
          _
        // Predicated region
        $region29: #{tpu_custom_call.1} parent=11 // pred_check
          %p258 = pneg %p163
        $region30: #{tpu_custom_call.1} parent=11 // pred_check_branch
          %260 = sbr.rel (%p258) target = $region32
        $region31: #{tpu_custom_call.1} parent=11 // pred_region
          _
        $region32: #{tpu_custom_call.1} parent=11 // pred_fallthru
          _
        // Predicated region
        $region33: #{tpu_custom_call.1} parent=11 // pred_check
          %p261 = pneg %p184
        $region34: #{tpu_custom_call.1} parent=11 // pred_check_branch
          %263 = sbr.rel (%p261) target = $region36
        $region35: #{tpu_custom_call.1} parent=11 // pred_region
          _
        $region36: #{tpu_custom_call.1} parent=11 // pred_fallthru
          _
        // Predicated region
        $region37: #{tpu_custom_call.1} parent=11 // pred_check
          %p264 = pneg %p205
        $region38: #{tpu_custom_call.1} parent=11 // pred_check_branch
          %266 = sbr.rel (%p264) target = $region40
        $region39: #{tpu_custom_call.1} parent=11 // pred_region
          _
        $region40: #{tpu_custom_call.1} parent=11 // pred_fallthru
          _
      $region12: #{tpu_custom_call.1} parent=5 // pred_fallthru
        _
      %p267 = scmp.lt.s32.totalorder %s18, 2
      // Predicated region
      $region41: #{tpu_custom_call.1} parent=5 // pred_check
        %p268 = pneg %p267
      $region42: #{tpu_custom_call.1} parent=5 // pred_check_branch
        %270 = sbr.rel (%p268) target = $region44
      $region43: #{tpu_custom_call.1} parent=5 // pred_region
        // Predicated region
        $region45: #{tpu_custom_call.1} parent=43 // pred_check
          %p271 = pneg %p52
        $region46: #{tpu_custom_call.1} parent=43 // pred_check_branch
          %273 = sbr.rel (%p271) target = $region48
        $region47: #{tpu_custom_call.1} parent=43 // pred_region
          %s274 = sand.u32 %s42, 1
          %s275 = scalar_lea.sflag [#allocation6], %s274
          %s276 = sand.u32 %s42, 1
          %s277 = smul.addr %s276, 128
          %s278 = scalar_lea.vmem [#allocation5], %s277
          %s279 = smul.u32 2, %s25
          %s281 = ssub.s32 2048, 2048
          %282 = vsyncadd %s275, %s281
          %s283 = smul.addr %s279, 16
          %s284 = sadd.s32 %s26, %s283
          %s285 = smul.addr %s284, 128
          %s286 = scalar_lea.hbm %s0, %s285
          %s287 = sshll.u32 %s278, 4
          %s288 = int_to_ptr.vmem [resolvable:$true] %s287
          %293 = dma.hbm_to_vmem [thread:$0]  %s286, 2048, %s288, %s275, 256, 128, 8
        $region48: #{tpu_custom_call.1} parent=43 // pred_fallthru
          _
      $region44: #{tpu_custom_call.1} parent=5 // pred_fallthru
        _
      %p294 = scmp.le.s32.totalorder 1, %s18
      %p295 = scmp.lt.s32.totalorder %s18, 3
      %p296 = pnand %p294, %p295
      %p297 = pneg %p296
      // Predicated region
      $region49: #{tpu_custom_call.1} parent=5 // pred_check
        _
      $region50: #{tpu_custom_call.1} parent=5 // pred_check_branch
        %299 = sbr.rel (%p296) target = $region52
      $region51: #{tpu_custom_call.1} parent=5 // pred_region
        %s300 = ssub.s32 %s18, 1
        %s301 = sand.u32 %s45, 1
        %s302 = scalar_lea.sflag [#allocation6], %s301
        %s303 = sand.u32 %s45, 1
        %s304 = smul.addr %s303, 128
        %s305 = scalar_lea.vmem [#allocation5], %s304
        // Predicated region
        $region53: #{tpu_custom_call.1} parent=51 // pred_check
          %p306 = pneg %p58
        $region54: #{tpu_custom_call.1} parent=51 // pred_check_branch
          %308 = sbr.rel (%p306) target = $region56
        $region55: #{tpu_custom_call.1} parent=51 // pred_region
          %309 = dma.done %s302, 2048
        $region56: #{tpu_custom_call.1} parent=51 // pred_fallthru
          _
        %s310 = sand.u32 %s45, 1
        %s311 = scalar_lea.sflag [#allocation6], %s310
        %s312 = sand.u32 %s45, 1
        %s313 = smul.addr %s312, 128
        %s314 = scalar_lea.vmem [#allocation5], %s313
        %p315 = pneg %p58
        %p316 = pneg %p55
        %p317 = pneg %p79
        %p318 = pneg %p76
        %p319 = pneg %p100
        %p320 = pneg %p97
        %p321 = pneg %p121
        %p322 = pneg %p118
        %p323 = pneg %p142
        %p324 = pneg %p139
        %p325 = pneg %p163
        %p326 = pneg %p160
        %p327 = pneg %p184
        %p328 = pneg %p181
        %p329 = pneg %p205
        %p330 = pneg %p202
        %p331 = pneg %p231
        %p332 = pneg %p228
        %s333 = smul.u32 2, %s27
        %p335 = scmp.eq.s32.totalorder %s28, 0
        // Predicated region
        $region57: #{tpu_custom_call.1} parent=51 // pred_check
          %p336 = pneg %p335
        $region58: #{tpu_custom_call.1} parent=51 // pred_check_branch
          %338 = sbr.rel (%p336) target = $region60
        $region59: #{tpu_custom_call.1} parent=51 // pred_region
          %vm339 = vcmask 64512
          %340 = vst.msk [vmem:[#allocation2] sm:$0xff] %vm339, 0.0
          %341 = vst.msk [vmem:[#allocation2 + $0x8] sm:$0xff] %vm339, 0.0
          %vm342 = vcmask 130048
          %343 = vst.msk [vmem:[#allocation3] sm:$0xff] %vm342, 0
          %344 = vst.msk [vmem:[#allocation3 + $0x8] sm:$0xff] %vm342, 0
          %345 = vst.msk [vmem:[#allocation3 + $0x10] sm:$0xff] %vm342, 0
          %346 = vst.msk [vmem:[#allocation4] sm:$0xff] %vm342, 0
          %347 = vst.msk [vmem:[#allocation4 + $0x8] sm:$0xff] %vm342, 0
          %348 = vst.msk [vmem:[#allocation4 + $0x10] sm:$0xff] %vm342, 0
        $region60: #{tpu_custom_call.1} parent=51 // pred_fallthru
          _
        %v349 = vld [vmem:[#allocation2] sm:$0xff]
        %v350 = vld [vmem:[#allocation2 + $0x8] sm:$0xff]
        %v351 = vld [vmem:[%s305] sm:$0xff]
        %v352 = vld [vmem:[%s305 + $0x8] sm:$0xff]
        %v353 = vld [vmem:[%s305 + $0x10] sm:$0xff]
        %v354 = vld [vmem:[%s305 + $0x18] sm:$0xff]
        %v355 = vld [vmem:[%s305 + $0x20] sm:$0xff]
        %v356 = vld [vmem:[%s305 + $0x28] sm:$0xff]
        %v357 = vld [vmem:[%s305 + $0x30] sm:$0xff]
        %v358 = vld [vmem:[%s305 + $0x38] sm:$0xff]
        %v359 = vld [vmem:[%s305 + $0x40] sm:$0xff]
        %v360 = vld [vmem:[%s305 + $0x48] sm:$0xff]
        %v361 = vld [vmem:[%s305 + $0x50] sm:$0xff]
        %v362 = vld [vmem:[%s305 + $0x58] sm:$0xff]
        %v363 = vld [vmem:[%s305 + $0x60] sm:$0xff]
        %v364 = vld [vmem:[%s305 + $0x68] sm:$0xff]
        %v365 = vld [vmem:[%s305 + $0x70] sm:$0xff]
        %v366 = vld [vmem:[%s305 + $0x78] sm:$0xff]
        %367 = vadd.xlane.f32.xlu0 %v351
        %v368 = vpop.xlane.xlu0 %367
        %369 = vadd.xlane.f32.xlu0 %v352
        %v370 = vpop.xlane.xlu0 %369
        %371 = vadd.xlane.f32.xlu0 %v353
        %v372 = vpop.xlane.xlu0 %371
        %373 = vadd.xlane.f32.xlu0 %v354
        %v374 = vpop.xlane.xlu0 %373
        %375 = vadd.xlane.f32.xlu0 %v355
        %v376 = vpop.xlane.xlu0 %375
        %377 = vadd.xlane.f32.xlu0 %v356
        %v378 = vpop.xlane.xlu0 %377
        %379 = vadd.xlane.f32.xlu0 %v357
        %v380 = vpop.xlane.xlu0 %379
        %381 = vadd.xlane.f32.xlu0 %v358
        %v382 = vpop.xlane.xlu0 %381
        %383 = vadd.xlane.f32.xlu0 %v359
        %v384 = vpop.xlane.xlu0 %383
        %385 = vadd.xlane.f32.xlu0 %v360
        %v386 = vpop.xlane.xlu0 %385
        %387 = vadd.xlane.f32.xlu0 %v361
        %v388 = vpop.xlane.xlu0 %387
        %389 = vadd.xlane.f32.xlu0 %v362
        %v390 = vpop.xlane.xlu0 %389
        %391 = vadd.xlane.f32.xlu0 %v363
        %v392 = vpop.xlane.xlu0 %391
        %393 = vadd.xlane.f32.xlu0 %v364
        %v394 = vpop.xlane.xlu0 %393
        %395 = vadd.xlane.f32.xlu0 %v365
        %v396 = vpop.xlane.xlu0 %395
        %397 = vadd.xlane.f32.xlu0 %v366
        %v398 = vpop.xlane.xlu0 %397
        %v415 = vlaneseq
        %v416 = vand.u32 %v415, 127
        %v417 = vlaneseq
        %v418 = vshrl.u32 %v417, 7
        %v419 = vsub.s32 %v416, %v418
        %v420 = vrot.slane %v368, %v419
        %v421 = vlaneseq
        %v422 = vshrl.u32 %v421, 7
        %v423 = vsub.s32 %v416, %v422
        %v424 = vrot.slane %v370, %v423
        %v425 = vlaneseq
        %v426 = vshrl.u32 %v425, 7
        %v427 = vsub.s32 %v416, %v426
        %v428 = vrot.slane %v372, %v427
        %v429 = vlaneseq
        %v430 = vshrl.u32 %v429, 7
        %v431 = vsub.s32 %v416, %v430
        %v432 = vrot.slane %v374, %v431
        %v433 = vlaneseq
        %v434 = vshrl.u32 %v433, 7
        %v435 = vsub.s32 %v416, %v434
        %v436 = vrot.slane %v376, %v435
        %v437 = vlaneseq
        %v438 = vshrl.u32 %v437, 7
        %v439 = vsub.s32 %v416, %v438
        %v440 = vrot.slane %v378, %v439
        %v441 = vlaneseq
        %v442 = vshrl.u32 %v441, 7
        %v443 = vsub.s32 %v416, %v442
        %v444 = vrot.slane %v380, %v443
        %v445 = vlaneseq
        %v446 = vshrl.u32 %v445, 7
        %v447 = vsub.s32 %v416, %v446
        %v448 = vrot.slane %v382, %v447
        %v449 = vlaneseq
        %v450 = vshrl.u32 %v449, 7
        %v451 = vsub.s32 %v416, %v450
        %v452 = vrot.slane %v384, %v451
        %v453 = vlaneseq
        %v454 = vshrl.u32 %v453, 7
        %v455 = vsub.s32 %v416, %v454
        %v456 = vrot.slane %v386, %v455
        %v457 = vlaneseq
        %v458 = vshrl.u32 %v457, 7
        %v459 = vsub.s32 %v416, %v458
        %v460 = vrot.slane %v388, %v459
        %v461 = vlaneseq
        %v462 = vshrl.u32 %v461, 7
        %v463 = vsub.s32 %v416, %v462
        %v464 = vrot.slane %v390, %v463
        %v465 = vlaneseq
        %v466 = vshrl.u32 %v465, 7
        %v467 = vsub.s32 %v416, %v466
        %v468 = vrot.slane %v392, %v467
        %v469 = vlaneseq
        %v470 = vshrl.u32 %v469, 7
        %v471 = vsub.s32 %v416, %v470
        %v472 = vrot.slane %v394, %v471
        %v473 = vlaneseq
        %v474 = vshrl.u32 %v473, 7
        %v475 = vsub.s32 %v416, %v474
        %v476 = vrot.slane %v396, %v475
        %v477 = vlaneseq
        %v478 = vshrl.u32 %v477, 7
        %v479 = vsub.s32 %v416, %v478
        %v480 = vrot.slane %v398, %v479
        %vm481 = vcmask 1041409
        %v482 = vsel %vm481, %v424, %v420
        %vm483 = vcmask 1042434
        %v484 = vsel %vm483, %v428, %v482
        %vm485 = vcmask 1043459
        %v486 = vsel %vm485, %v432, %v484
        %vm487 = vcmask 1044484
        %v488 = vsel %vm487, %v436, %v486
        %vm489 = vcmask 1045509
        %v490 = vsel %vm489, %v440, %v488
        %vm491 = vcmask 1046534
        %v492 = vsel %vm491, %v444, %v490
        %vm493 = vcmask 1047559
        %v494 = vsel %vm493, %v448, %v492
        %v495 = vsel %vm481, %v456, %v452
        %v496 = vsel %vm483, %v460, %v495
        %v497 = vsel %vm485, %v464, %v496
        %v498 = vsel %vm487, %v468, %v497
        %v499 = vsel %vm489, %v472, %v498
        %v500 = vsel %vm491, %v476, %v499
        %v501 = vsel %vm493, %v480, %v500
        %v504 = vadd.f32 %v349, %v494
        %v505 = vadd.f32 %v350, %v501
        %vm506 = vcmask 64512
        %507 = vst.msk [vmem:[#allocation2] sm:$0xff] %vm506, %v504
        %508 = vst.msk [vmem:[#allocation2 + $0x8] sm:$0xff] %vm506, %v505
        %p509 = scmp.eq.s32.totalorder %s28, 1
        // Predicated region
        $region61: #{tpu_custom_call.1} parent=51 // pred_check
          %p510 = pneg %p509
        $region62: #{tpu_custom_call.1} parent=51 // pred_check_branch
          %512 = sbr.rel (%p510) target = $region64
        $region63: #{tpu_custom_call.1} parent=51 // pred_region
          %v513 = vld [vmem:[#allocation2] sm:$0xff]
          %v514 = vld [vmem:[#allocation2 + $0x8] sm:$0xff]
          %v515 = vmul.f32 %v513, 0.00390625
          %v516 = vmul.f32 %v514, 0.00390625
          %518 = vrot.lane.b32.xlu0 %v516, 8
          %v519 = vpop.permute.xlu0 %518
          %v521 = vsel %vm506, %v515, %v519
          %v522 = vpack.c.bf16 %v521, %v521
          %v523 = vld [vmem:[%s1] sm:$0xf]
          %v524 = vld [vmem:[%s1 + $0x4] sm:$0xf]
          %v527 = vunpack.c.l.b16 %v523
          %v528 = vunpack.c.l.b16 %v524
          %v529 = vpack.c.b16 %v528, %v527
          %vm531 = vcmask 130048
          %v533 = vsel %vm531, %v522, 0
          %535 = vmatprep.subr.bf16.mxu0 0
          %536 = vmatpush1.bf16.msra.mxu0 %v529
          %537 = vmatprep.subr.bf16.mxu0 0
          %538 = vmatpush1.bf16.msra.mxu0 0
          %539 = vmatprep.subr.bf16.mxu0 0
          %540 = vmatpush1.bf16.msra.mxu0 0
          %541 = vmatprep.subr.bf16.mxu0 0
          %542 = vmatpush1.bf16.msra.mxu0 0
          %543 = vmatprep.subr.bf16.mxu0 0
          %544 = vmatpush1.bf16.msra.mxu0 0
          %545 = vmatprep.subr.bf16.mxu0 0
          %546 = vmatpush1.bf16.msra.mxu0 0
          %547 = vmatprep.subr.bf16.mxu0 0
          %548 = vmatpush1.bf16.msra.mxu0 0
          %549 = vmatprep.subr.bf16.mxu0 0
          %550 = vmatpush1.bf16.msra.mxu0 0
          %551 = vmatprep.subr.bf16.mxu0 0
          %552 = vmatpush1.bf16.msra.mxu0 0
          %553 = vmatprep.subr.bf16.mxu0 0
          %554 = vmatpush1.bf16.msra.mxu0 0
          %555 = vmatprep.subr.bf16.mxu0 0
          %556 = vmatpush1.bf16.msra.mxu0 0
          %557 = vmatprep.subr.bf16.mxu0 0
          %558 = vmatpush1.bf16.msra.mxu0 0
          %559 = vmatprep.subr.bf16.mxu0 0
          %560 = vmatpush1.bf16.msra.mxu0 0
          %561 = vmatprep.subr.bf16.mxu0 0
          %562 = vmatpush1.bf16.msra.mxu0 0
          %563 = vmatprep.subr.bf16.mxu0 0
          %564 = vmatpush1.bf16.msra.mxu0 0
          %565 = vmatprep.subr.bf16.mxu0 0
          %566 = vmatpush1.bf16.msra.mxu0 0
          %567 = vmatprep.mubr.bf16.mxu0 0
          %568 = vmatmul.mubr.bf16.gmra.mrb[0].mxu0 %v533
          %v569 = vpop.f32.mrb[0].mxu0
          %v570 = vadd.f32 0.0, %v569
          %v571 = vpop.f32.mrb[0].mxu0
          %v572 = vpop.f32.mrb[0].mxu0
          %v573 = vpop.f32.mrb[0].mxu0
          %574 = vdwg.mxu0
          %v575 = vld [vmem:[%s3] sm:$0xf]
          %v576 = vpack.c.bf16 %v570, %v570
          %v578 = vsel %vm506, %v575, 0
          %vm580 = vcmask 1043456
          %v582 = vsel %vm580, %v576, 0
          %584 = vmatprep.subr.bf16.mxu0 0
          %585 = vmatpush1.bf16.msra.mxu0 %v582
          %586 = vmatprep.subr.bf16.mxu0 0
          %587 = vmatpush1.bf16.msra.mxu0 0
          %588 = vmatprep.subr.bf16.mxu0 0
          %589 = vmatpush1.bf16.msra.mxu0 0
          %590 = vmatprep.subr.bf16.mxu0 0
          %591 = vmatpush1.bf16.msra.mxu0 0
          %592 = vmatprep.subr.bf16.mxu0 0
          %593 = vmatpush1.bf16.msra.mxu0 0
          %594 = vmatprep.subr.bf16.mxu0 0
          %595 = vmatpush1.bf16.msra.mxu0 0
          %596 = vmatprep.subr.bf16.mxu0 0
          %597 = vmatpush1.bf16.msra.mxu0 0
          %598 = vmatprep.subr.bf16.mxu0 0
          %599 = vmatpush1.bf16.msra.mxu0 0
          %600 = vmatprep.subr.bf16.mxu0 0
          %601 = vmatpush1.bf16.msra.mxu0 0
          %602 = vmatprep.subr.bf16.mxu0 0
          %603 = vmatpush1.bf16.msra.mxu0 0
          %604 = vmatprep.subr.bf16.mxu0 0
          %605 = vmatpush1.bf16.msra.mxu0 0
          %606 = vmatprep.subr.bf16.mxu0 0
          %607 = vmatpush1.bf16.msra.mxu0 0
          %608 = vmatprep.subr.bf16.mxu0 0
          %609 = vmatpush1.bf16.msra.mxu0 0
          %610 = vmatprep.subr.bf16.mxu0 0
          %611 = vmatpush1.bf16.msra.mxu0 0
          %612 = vmatprep.subr.bf16.mxu0 0
          %613 = vmatpush1.bf16.msra.mxu0 0
          %614 = vmatprep.subr.bf16.mxu0 0
          %615 = vmatpush1.bf16.msra.mxu0 0
          %616 = vmatprep.mubr.bf16.mxu0 0
          %617 = vmatmul.mubr.bf16.gmra.mrb[0].mxu0 %v578
          %v618 = vpop.f32.mrb[0].mxu0
          %v619 = vadd.f32 0.0, %v618
          %v620 = vpop.f32.mrb[0].mxu0
          %v621 = vpop.f32.mrb[0].mxu0
          %v622 = vpop.f32.mrb[0].mxu0
          %623 = vdwg.mxu0
          %v624 = vpack.c.bf16 %v619, %v619
          %v625 = vld [vmem:[%s2] sm:$0x1]
          %vm626 = vcmask 15360
          %v628 = vsel %vm626, %v624, 0
          %vm630 = vcmask 1040384
          %v632 = vsel %vm630, %v625, 0
          %634 = vmatprep.subr.bf16.mxu0 0
          %635 = vmatpush1.bf16.msra.mxu0 %v632
          %636 = vmatprep.subr.bf16.mxu0 0
          %637 = vmatpush1.bf16.msra.mxu0 0
          %638 = vmatprep.subr.bf16.mxu0 0
          %639 = vmatpush1.bf16.msra.mxu0 0
          %640 = vmatprep.subr.bf16.mxu0 0
          %641 = vmatpush1.bf16.msra.mxu0 0
          %642 = vmatprep.subr.bf16.mxu0 0
          %643 = vmatpush1.bf16.msra.mxu0 0
          %644 = vmatprep.subr.bf16.mxu0 0
          %645 = vmatpush1.bf16.msra.mxu0 0
          %646 = vmatprep.subr.bf16.mxu0 0
          %647 = vmatpush1.bf16.msra.mxu0 0
          %648 = vmatprep.subr.bf16.mxu0 0
          %649 = vmatpush1.bf16.msra.mxu0 0
          %650 = vmatprep.subr.bf16.mxu0 0
          %651 = vmatpush1.bf16.msra.mxu0 0
          %652 = vmatprep.subr.bf16.mxu0 0
          %653 = vmatpush1.bf16.msra.mxu0 0
          %654 = vmatprep.subr.bf16.mxu0 0
          %655 = vmatpush1.bf16.msra.mxu0 0
          %656 = vmatprep.subr.bf16.mxu0 0
          %657 = vmatpush1.bf16.msra.mxu0 0
          %658 = vmatprep.subr.bf16.mxu0 0
          %659 = vmatpush1.bf16.msra.mxu0 0
          %660 = vmatprep.subr.bf16.mxu0 0
          %661 = vmatpush1.bf16.msra.mxu0 0
          %662 = vmatprep.subr.bf16.mxu0 0
          %663 = vmatpush1.bf16.msra.mxu0 0
          %664 = vmatprep.subr.bf16.mxu0 0
          %665 = vmatpush1.bf16.msra.mxu0 0
          %666 = vmatprep.mubr.bf16.mxu0 0
          %667 = vmatmul.mubr.bf16.gmra.mrb[0].mxu0 %v628
          %v668 = vpop.f32.mrb[0].mxu0
          %v669 = vadd.f32 0.0, %v668
          %v670 = vpop.f32.mrb[0].mxu0
          %v671 = vpop.f32.mrb[0].mxu0
          %v672 = vpop.f32.mrb[0].mxu0
          %673 = vdwg.mxu0
          %v674 = vadd.f32 %v521, %v669
          %v675 = vld [vmem:[%s4] sm:$0xff]
          %677 = vset.pattern.permute.xlu0 0
          %678 = vperm.xlu0 %677, %v675
          %v679 = vpop.permute.xlu0 %678
          %v681 = vadd.f32 %v674, %v679
          %vm682 = vcmp.lt.s32.totalorder %v416, 0
          %v683 = vsub.s32 0, %v416
          %v684 = vsel %vm682, %v683, %v416
          %v685 = vshrl.u32 %v684, 3
          %v686 = vand.u32 %v684, 7
          %v687 = vsub.s32 0, %v686
          %v688 = vsel %vm682, %v687, %v686
          %vm689 = vcmp.ne.s32.totalorder %v688, 0
          %vm690 = vcmp.lt.s32.totalorder %v688, 0
          %vm691 = vmand %vm690, %vm689
          %v692 = vadd.s32 %v688, 8
          %v693 = vsel %vm691, %v692, %v688
          %695 = vrot.lane.b32.xlu0 %v681, 113
          %v696 = vpop.permute.xlu0 %695
          %698 = vrot.lane.b32.xlu0 %v681, 1
          %v699 = vpop.permute.xlu0 %698
          %vm701 = vcmask 7168
          %v702 = vsel %vm701, %v696, %v699
          %vm703 = vcmp.ge.s32.totalorder %v693, 1
          %vm704 = vcmp.lt.s32.totalorder %v693, 8
          %vm705 = vmand %vm703, %vm704
          %v706 = vsel %vm705, %v702, 0.0
          %v707 = vpack.c.bf16 %v706, %v706
          %vm708 = vcmask 125952
          %709 = vst.msk [vmem:[#allocation3] sm:$0xf] %vm708, %v707
          %v710 = vpack.c.bf16 %v681, %v681
          %711 = vst.msk [vmem:[#allocation3 + $0x8] sm:$0xf] %vm708, %v710
          %712 = vrot.lane.b32.xlu0 %v681, 127
          %v713 = vpop.permute.xlu0 %712
          %715 = vrot.lane.b32.xlu0 %v681, 15
          %v716 = vpop.permute.xlu0 %715
          %vm718 = vcmask 121856
          %v719 = vsel %vm718, %v713, %v716
          %vm720 = vcmp.ge.s32.totalorder %v693, 0
          %vm721 = vcmp.lt.s32.totalorder %v693, 7
          %vm722 = vmand %vm720, %vm721
          %v723 = vsel %vm722, %v719, 0.0
          %v724 = vpack.c.bf16 %v723, %v723
          %725 = vst.msk [vmem:[#allocation3 + $0x10] sm:$0xf] %vm708, %v724
          %v726 = vld [vmem:[%s5] sm:$0x1]
          %v727 = vld [vmem:[#allocation3] sm:$0xff]
          %v728 = vld [vmem:[#allocation3 + $0x8] sm:$0xff]
          %v729 = vld [vmem:[#allocation3 + $0x10] sm:$0xff]
          %v730 = vld [vmem:[%s6] sm:$0x3]
          %732 = vset.pattern.permute.xlu0 0
          %733 = vperm.xlu0 %732, %v730
          %v734 = vpop.permute.xlu0 %733
          %vm736 = vcmask 392192
          %v738 = vsel %vm736, %v726, 0
          %740 = vmatprep.subr.bf16.mxu0 0
          %741 = vmatpush1.bf16.msra.mxu0 %v727
          %742 = vmatprep.subr.bf16.mxu0 0
          %743 = vmatpush1.bf16.msra.mxu0 %v728
          %744 = vmatprep.subr.bf16.mxu0 0
          %745 = vmatpush1.bf16.msra.mxu0 %v729
          %746 = vmatprep.subr.bf16.mxu0 0
          %747 = vmatpush1.bf16.msra.mxu0 0
          %748 = vmatprep.subr.bf16.mxu0 0
          %749 = vmatpush1.bf16.msra.mxu0 0
          %750 = vmatprep.subr.bf16.mxu0 0
          %751 = vmatpush1.bf16.msra.mxu0 0
          %752 = vmatprep.subr.bf16.mxu0 0
          %753 = vmatpush1.bf16.msra.mxu0 0
          %754 = vmatprep.subr.bf16.mxu0 0
          %755 = vmatpush1.bf16.msra.mxu0 0
          %756 = vmatprep.subr.bf16.mxu0 0
          %757 = vmatpush1.bf16.msra.mxu0 0
          %758 = vmatprep.subr.bf16.mxu0 0
          %759 = vmatpush1.bf16.msra.mxu0 0
          %760 = vmatprep.subr.bf16.mxu0 0
          %761 = vmatpush1.bf16.msra.mxu0 0
          %762 = vmatprep.subr.bf16.mxu0 0
          %763 = vmatpush1.bf16.msra.mxu0 0
          %764 = vmatprep.subr.bf16.mxu0 0
          %765 = vmatpush1.bf16.msra.mxu0 0
          %766 = vmatprep.subr.bf16.mxu0 0
          %767 = vmatpush1.bf16.msra.mxu0 0
          %768 = vmatprep.subr.bf16.mxu0 0
          %769 = vmatpush1.bf16.msra.mxu0 0
          %770 = vmatprep.subr.bf16.mxu0 0
          %771 = vmatpush1.bf16.msra.mxu0 0
          %772 = vmatprep.mubr.bf16.mxu0 0
          %773 = vmatmul.mubr.bf16.gmra.mrb[0].mxu0 %v738
          %v774 = vpop.f32.mrb[0].mxu0
          %v775 = vadd.f32 %v734, %v774
          %v776 = vpop.f32.mrb[0].mxu0
          %v777 = vpop.f32.mrb[0].mxu0
          %v778 = vpop.f32.mrb[0].mxu0
          %779 = vdwg.mxu0
          %v780 = vmax.f32 %v775, 0.0
          %782 = vrot.lane.b32.xlu0 %v780, 113
          %v783 = vpop.permute.xlu0 %782
          %785 = vrot.lane.b32.xlu0 %v780, 1
          %v786 = vpop.permute.xlu0 %785
          %v788 = vsel %vm701, %v783, %v786
          %v789 = vsel %vm705, %v788, 0.0
          %v790 = vpack.c.bf16 %v789, %v789
          %vm791 = vcmask 122880
          %792 = vst.msk [vmem:[#allocation4] sm:$0x1] %vm791, %v790
          %v793 = vpack.c.bf16 %v780, %v780
          %794 = vst.msk [vmem:[#allocation4 + $0x8] sm:$0x1] %vm791, %v793
          %795 = vrot.lane.b32.xlu0 %v780, 127
          %v796 = vpop.permute.xlu0 %795
          %798 = vrot.lane.b32.xlu0 %v780, 15
          %v799 = vpop.permute.xlu0 %798
          %v801 = vsel %vm718, %v796, %v799
          %v802 = vsel %vm722, %v801, 0.0
          %v803 = vpack.c.bf16 %v802, %v802
          %804 = vst.msk [vmem:[#allocation4 + $0x10] sm:$0x1] %vm791, %v803
          %v805 = vld [vmem:[%s7] sm:$0xf]
          %v806 = vld [vmem:[#allocation4] sm:$0xff]
          %v807 = vld [vmem:[#allocation4 + $0x8] sm:$0xff]
          %v808 = vld [vmem:[#allocation4 + $0x10] sm:$0xff]
          %v810 = vsel %vm736, %v805, 0
          %812 = vmatprep.subr.bf16.mxu0 0
          %813 = vmatpush1.bf16.msra.mxu0 %v806
          %814 = vmatprep.subr.bf16.mxu0 0
          %815 = vmatpush1.bf16.msra.mxu0 %v807
          %816 = vmatprep.subr.bf16.mxu0 0
          %817 = vmatpush1.bf16.msra.mxu0 %v808
          %818 = vmatprep.subr.bf16.mxu0 0
          %819 = vmatpush1.bf16.msra.mxu0 0
          %820 = vmatprep.subr.bf16.mxu0 0
          %821 = vmatpush1.bf16.msra.mxu0 0
          %822 = vmatprep.subr.bf16.mxu0 0
          %823 = vmatpush1.bf16.msra.mxu0 0
          %824 = vmatprep.subr.bf16.mxu0 0
          %825 = vmatpush1.bf16.msra.mxu0 0
          %826 = vmatprep.subr.bf16.mxu0 0
          %827 = vmatpush1.bf16.msra.mxu0 0
          %828 = vmatprep.subr.bf16.mxu0 0
          %829 = vmatpush1.bf16.msra.mxu0 0
          %830 = vmatprep.subr.bf16.mxu0 0
          %831 = vmatpush1.bf16.msra.mxu0 0
          %832 = vmatprep.subr.bf16.mxu0 0
          %833 = vmatpush1.bf16.msra.mxu0 0
          %834 = vmatprep.subr.bf16.mxu0 0
          %835 = vmatpush1.bf16.msra.mxu0 0
          %836 = vmatprep.subr.bf16.mxu0 0
          %837 = vmatpush1.bf16.msra.mxu0 0
          %838 = vmatprep.subr.bf16.mxu0 0
          %839 = vmatpush1.bf16.msra.mxu0 0
          %840 = vmatprep.subr.bf16.mxu0 0
          %841 = vmatpush1.bf16.msra.mxu0 0
          %842 = vmatprep.subr.bf16.mxu0 0
          %843 = vmatpush1.bf16.msra.mxu0 0
          %844 = vmatprep.mubr.bf16.mxu0 0
          %845 = vmatmul.mubr.bf16.gmra.mrb[0].mxu0 %v810
          %v846 = vpop.f32.mrb[0].mxu0
          %v847 = vadd.f32 1.0, %v846
          %v848 = vpop.f32.mrb[0].mxu0
          %v849 = vpop.f32.mrb[0].mxu0
          %v850 = vpop.f32.mrb[0].mxu0
          %851 = vdwg.mxu0
          %852 = vst.msk [vmem:[#allocation8] sm:$0xff] %vm531, %v847
        $region64: #{tpu_custom_call.1} parent=51 // pred_fallthru
          _
        // Predicated region
        $region65: #{tpu_custom_call.1} parent=51 // pred_check
          %p853 = pneg %p228
        $region66: #{tpu_custom_call.1} parent=51 // pred_check_branch
          %855 = sbr.rel (%p853) target = $region68
        $region67: #{tpu_custom_call.1} parent=51 // pred_region
          %s857 = ssub.s32 128, 128
          %858 = vsyncadd [#allocation7], %s857
          %s859 = smul.addr %s27, 128
          %s860 = scalar_lea.hbm %s8, %s859
          %s862 = sshll.u32 [#allocation8], 4
          %s863 = int_to_ptr.vmem [resolvable:$true] %s862
          %865 = dma.vmem_to_hbm [thread:$0]  %s863, 128, %s860, [#allocation7]
        $region68: #{tpu_custom_call.1} parent=51 // pred_fallthru
          _
        // Predicated region
        $region69: #{tpu_custom_call.1} parent=51 // pred_check
          %p866 = pneg %p228
        $region70: #{tpu_custom_call.1} parent=51 // pred_check_branch
          %868 = sbr.rel (%p866) target = $region72
        $region71: #{tpu_custom_call.1} parent=51 // pred_region
          %869 = dma.done [#allocation7], 128
        $region72: #{tpu_custom_call.1} parent=51 // pred_fallthru
          _
      $region52: #{tpu_custom_call.1} parent=5 // pred_fallthru
        _
      %p870 = scmp.le.s32.totalorder 2, %s18
      // Predicated region
      $region73: #{tpu_custom_call.1} parent=5 // pred_check
        %p871 = pneg %p870
      $region74: #{tpu_custom_call.1} parent=5 // pred_check_branch
        %873 = sbr.rel (%p871) target = $region76
      $region75: #{tpu_custom_call.1} parent=5 // pred_region
        %s874 = ssub.s32 %s18, 2
      $region76: #{tpu_custom_call.1} parent=5 // pred_fallthru
        _
    $region6: #{tpu_custom_call.1} parent=1 // loop_footer
      %s22 = sadd.s32 1, %s18
    $region7: #{tpu_custom_call.1} parent=1 // loop_footer_branch
      %17 = sbr.rel target = $region3
    $region8: #{tpu_custom_call.1} parent=1 // loop_exit
      _
    %875 = vsyncpa [#allocation6], 1
    %s876 = scalar_lea.sflag [#allocation6], 1
    %877 = vsyncpa %s876, 1
    %878 = vsyncpa [#allocation7], 1
    %s879 = scalar_lea.sflag [#allocation7], 1
    %880 = vsyncpa %s879, 1

</llo_original>
